<compile_context>
chip_gen: v5e
topology: v5e:2x2
jax: 0.10.0
libtpu: 0.0.40
codegen_flags: <defaults>
</compile_context>

<pallas_src>
import functools
import math

import jax
import jax.numpy as jnp
from jax.experimental import pallas as pl
from jax.experimental.pallas import tpu as pltpu


# --------------------------------------------------------------------------------------
# Kernels
# --------------------------------------------------------------------------------------

def _packed_logprob_kernel(*refs, standard):
    """Packed path (D | 128): x was reshaped row-major (free) to (M, 128) with G = 128 // D
    whole samples per 128-lane row.  Blocks:
      x:   (tile, 128)  lane-dense input, zero VMEM lane padding
      sel: (128, G)     block-diagonal 0/1 matrix, sel[g*D + d, g] = 1
      out: (tile, G)
    The per-sample (segmented) lane reduction is a single matmul on the otherwise-idle MXU,
    keeping VPU work at ~1 cast + 1 mul per element (+ sub/mul when not standard)."""
    if standard:
        x_ref, sel_ref, const_ref, out_ref = refs
        z = x_ref[...].astype(jnp.float32)
    else:
        x_ref, mean_ref, inv_std_ref, sel_ref, const_ref, out_ref = refs
        z = (x_ref[...].astype(jnp.float32) - mean_ref[...]) * inv_std_ref[...]
    s = jnp.dot(z * z, sel_ref[...],
                preferred_element_type=jnp.float32,
                precision=jax.lax.Precision.HIGHEST)
    out_ref[...] = -0.5 * s + const_ref[0]


def _rows_logprob_kernel(*refs, standard):
    """General path: blocks x (tile, D), out (tile, 1); reduce over the event (lane) dim."""
    if standard:
        x_ref, const_ref, out_ref = refs
        z = x_ref[...].astype(jnp.float32)
    else:
        x_ref, mean_ref, inv_std_ref, const_ref, out_ref = refs
        z = (x_ref[...].astype(jnp.float32) - mean_ref[...]) * inv_std_ref[...]
    # TODO(synk): on v7x this lane reduction could additionally be offloaded to the idle MXU
    # (dot with a ones (D, 1) tile) if the VALU slot ever binds for very large D.
    out_ref[...] = -0.5 * jnp.sum(z * z, axis=-1, keepdims=True) + const_ref[0]


# --------------------------------------------------------------------------------------
# Wrapper helpers
# --------------------------------------------------------------------------------------

def _ceil_to(a, m):
    return -(-a // m) * m


def _chip_tuning():
    """(target_block_bytes, vmem_limit_bytes) per TPU generation."""
    try:
        kind = jax.devices()[0].device_kind.lower()
    except Exception:
        kind = ""
    if "v7" in kind:
        return 4 << 20, None            # 64 MiB physical VMEM: keep blocks modest
    if any(t in kind for t in ("v4", "v5", "v6")):
        return 8 << 20, 64 << 20        # 128 MiB physical VMEM: amortize per-step overhead
    return 4 << 20, None


def _choose_tile(n_rows, bytes_per_row, row_multiple, target_bytes, min_steps=4):
    """Block row-count: a multiple of `row_multiple`, ~target_bytes of (padded) VMEM per
    block, floored so only the tail block is partial, and capped so the grid has >=
    min_steps steps when the problem is big enough (2 per TensorCore on v7x)."""
    if n_rows < row_multiple:
        return max(1, n_rows)           # full-dim block (allowed: equals the array dim)
    tile = (target_bytes // max(1, bytes_per_row)) // row_multiple * row_multiple
    n_floor = (n_rows // row_multiple) * row_multiple
    tile = max(row_multiple, min(tile, n_floor))
    if n_rows >= min_steps * row_multiple:
        cap = max(row_multiple, (n_rows // min_steps) // row_multiple * row_multiple)
        tile = min(tile, cap)
    return tile


# --------------------------------------------------------------------------------------
# Public wrapper
# --------------------------------------------------------------------------------------

def gaussian_base_log_prob(x, mean=None, std=None, *, standard=False,
                           target_block_bytes=None, vmem_limit_bytes=None):
    """Independent(Normal(mean, std), 1).log_prob(x) with a Pallas TPU kernel.

    x: (..., D) float32 or bfloat16.  Returns float32 of shape x.shape[:-1].
    standard=True specializes to mean=0, std=1 (what GaussianBase fixes), dropping the
    per-element subtract/scale and the mean/inv_std operands entirely.
    """
    if x.ndim < 1:
        raise ValueError("x must have at least one (event) dimension")
    *batch_shape, D = x.shape
    x2d = x.reshape(-1, D)
    N = x2d.shape[0]
    if N == 0:
        return jnp.zeros(tuple(batch_shape), jnp.float32)
    itemsize = jnp.dtype(x.dtype).itemsize

    default_tb, default_vl = _chip_tuning()
    if target_block_bytes is None:
        target_block_bytes = default_tb
    if vmem_limit_bytes is None:
        vmem_limit_bytes = default_vl

    cp_kwargs = dict(dimension_semantics=("parallel",))
    if vmem_limit_bytes is not None:
        cp_kwargs["vmem_limit_bytes"] = int(vmem_limit_bytes)
    compiler_params = pltpu.CompilerParams(**cp_kwargs)

    if standard:
        # mean = 0, std = 1  =>  sum(log std) == 0.
        const = jnp.full((1,), -0.5 * D * math.log(2.0 * math.pi), dtype=jnp.float32)
        mean_f = inv_std_f = None
    else:
        if mean is None or std is None:
            raise ValueError("mean and std are required when standard=False")
        mean_f = jnp.asarray(mean, jnp.float32).reshape(D)
        std_f = jnp.asarray(std, jnp.float32).reshape(D)
        inv_std_f = 1.0 / std_f
        # Hoisted per-distribution constant: -(sum(log std) + D * 0.5 * log(2*pi)).
        const = (-(jnp.sum(jnp.log(std_f)) + 0.5 * D * math.log(2.0 * math.pi))
                 ).reshape(1).astype(jnp.float32)

    out_row_vmem = 128 * 4  # the (rows, <=128) f32 output block pads its lane dim to 128 in VMEM

    packed = (D < 128) and (128 % D == 0) and ((N * D) % 128 == 0)
    if packed:
        # --- Packed path: free row-major reshape, lane-dense input, MXU segmented reduce. ---
        G = 128 // D                     # samples per 128-lane row
        M = (N * D) // 128               # packed rows
        xp = x2d.reshape(M, 128)         # pure bitcast of a contiguous array: no HBM pass
        lane = jnp.arange(128, dtype=jnp.int32)
        sel = (lane[:, None] // D == jnp.arange(G, dtype=jnp.int32)[None, :]
               ).astype(jnp.float32)     # (128, G) block-diagonal ones
        tile = _choose_tile(M, 128 * itemsize + out_row_vmem, 8, target_block_bytes)
        grid = (pl.cdiv(M, tile),)

        in_specs = [pl.BlockSpec((tile, 128), lambda i: (i, 0))]
        args = [xp]
        if not standard:
            # Pre-tile (D,) params into one lane-dense (1, 128) row: sublane broadcast in-kernel
            # is the cheap direction; no repeated lane broadcasts per vreg column.
            in_specs += [pl.BlockSpec((1, 128), lambda i: (0, 0)),
                         pl.BlockSpec((1, 128), lambda i: (0, 0))]
            args += [jnp.tile(mean_f, G).reshape(1, 128),
                     jnp.tile(inv_std_f, G).reshape(1, 128)]
        in_specs += [pl.BlockSpec((128, G), lambda i: (0, 0)),
                     pl.BlockSpec(memory_space=pltpu.MemorySpace.SMEM)]
        args += [sel, const]

        out = pl.pallas_call(
            functools.partial(_packed_logprob_kernel, standard=standard),
            out_shape=jax.ShapeDtypeStruct((M, G), jnp.float32),
            grid_spec=pltpu.PrefetchScalarGridSpec(
                num_scalar_prefetch=0,
                grid=grid,
                in_specs=in_specs,
                out_specs=pl.BlockSpec((tile, G), lambda i: (i, 0)),
            ),
            compiler_params=compiler_params,
        )(*args)
        # Row-major (M, G) -> (N,) matches sample order n = row * G + g exactly.
        out_flat = out.reshape(-1)
    else:
        # --- General rows path: (tile, D) blocks straight from the (N, D) layout, no pad. ---
        d_pad_lanes = _ceil_to(max(D, 1), 128)      # VMEM lane padding (not HBM traffic)
        tile = _choose_tile(N, d_pad_lanes * itemsize + out_row_vmem, 8, target_block_bytes)
        grid = (pl.cdiv(N, tile),)

        in_specs = [pl.BlockSpec((tile, D), lambda i: (i, 0))]
        args = [x2d]
        if not standard:
            in_specs += [pl.BlockSpec((1, D), lambda i: (0, 0)),
                         pl.BlockSpec((1, D), lambda i: (0, 0))]
            args += [mean_f.reshape(1, D), inv_std_f.reshape(1, D)]
        in_specs += [pl.BlockSpec(memory_space=pltpu.MemorySpace.SMEM)]
        args += [const]

        out = pl.pallas_call(
            functools.partial(_rows_logprob_kernel, standard=standard),
            out_shape=jax.ShapeDtypeStruct((N, 1), jnp.float32),
            grid_spec=pltpu.PrefetchScalarGridSpec(
                num_scalar_prefetch=0,
                grid=grid,
                in_specs=in_specs,
                out_specs=pl.BlockSpec((tile, 1), lambda i: (i, 0)),
            ),
            compiler_params=compiler_params,
        )(*args)
        out_flat = out[:, 0]

    return out_flat.reshape(tuple(batch_shape))


# --------------------------------------------------------------------------------------
# Module port
# --------------------------------------------------------------------------------------

class _IndependentNormal:
    """Minimal stand-in for td.Independent(td.Normal(mean, std), 1)."""

    def __init__(self, mean, std, standard=False):
        self.mean, self.std, self.standard = mean, std, standard

    def log_prob(self, x):
        return gaussian_base_log_prob(x, self.mean, self.std, standard=self.standard)

    def sample(self, key, sample_shape=()):
        # TODO(synk): sampling is plain RNG glue; no Pallas kernel needed.
        shape = tuple(sample_shape) + self.mean.shape
        return self.mean + self.std * jax.random.normal(key, shape, dtype=jnp.float32)


class GaussianBase:
    """JAX port of the PyTorch GaussianBase module.

    Parameters (deterministic, matching nn.Parameter(torch.zeros/ones(D), requires_grad=False)):
      mean = zeros(D), std = ones(D).  Because they are fixed, the standard-normal
      specialized kernel (no per-element subtract/scale) is used.
    """

    def __init__(self, D):
        self.D = D
        self.mean = jnp.zeros((D,), dtype=jnp.float32)
        self.std = jnp.ones((D,), dtype=jnp.float32)

    def forward(self):
        return _IndependentNormal(self.mean, self.std, standard=True)

    __call__ = forward

    def log_prob(self, x):
        return self.forward().log_prob(x)


def _reference_log_prob(x, mean, std):
    xf = x.astype(jnp.float32)
    z = (xf - mean) / std
    return jnp.sum(-0.5 * z * z - jnp.log(std) - 0.5 * jnp.log(2.0 * jnp.pi), axis=-1)


if __name__ == "__main__":
    key = jax.random.PRNGKey(0)
    k = jax.random.split(key, 8)

    # 1) Packed path (D | 128): standard GaussianBase, single grid step.
    D1, N1 = 32, 64
    base1 = GaussianBase(D1)
    x1 = jax.random.normal(k[0], (N1, D1), dtype=jnp.float32)
    lp1 = jax.block_until_ready(base1.log_prob(x1))
    assert lp1.shape == (N1,)
    assert jnp.allclose(lp1, _reference_log_prob(x1, base1.mean, base1.std), atol=1e-4, rtol=1e-5)

    # 2) Packed path with a multi-step grid and a partial tail block (no host-side pad).
    N2 = 132
    x2 = jax.random.normal(k[1], (N2, D1), dtype=jnp.float32)
    lp2 = jax.block_until_ready(
        gaussian_base_log_prob(x2, standard=True, target_block_bytes=16 << 10))
    assert jnp.allclose(lp2, _reference_log_prob(x2, base1.mean, base1.std), atol=1e-4, rtol=1e-5)

    # 3) General rows path (wide D), multi-step grid with a partial tail block.
    D3, N3 = 256, 52
    base3 = GaussianBase(D3)
    x3 = jax.random.normal(k[2], (N3, D3), dtype=jnp.float32)
    lp3 = jax.block_until_ready(
        gaussian_base_log_prob(x3, standard=True, target_block_bytes=32 << 10))
    assert jnp.allclose(lp3, _reference_log_prob(x3, base3.mean, base3.std), atol=1e-4, rtol=1e-5)

    # 4) Narrow D that does not divide 128: falls back to the rows path (VMEM lane padding only).
    D4, N4 = 48, 16
    base4 = GaussianBase(D4)
    x4 = jax.random.normal(k[3], (N4, D4), dtype=jnp.float32)
    lp4 = jax.block_until_ready(base4.log_prob(x4))
    assert jnp.allclose(lp4, _reference_log_prob(x4, base4.mean, base4.std), atol=1e-4, rtol=1e-5)

    # 5) Non-standard mean/std (general kernel branch) on both the packed and rows paths.
    mean5 = 0.5 * jax.random.normal(k[4], (D1,), dtype=jnp.float32)
    std5 = jnp.exp(0.25 * jax.random.normal(k[5], (D1,), dtype=jnp.float32))
    lp5 = jax.block_until_ready(gaussian_base_log_prob(x1, mean5, std5))
    assert jnp.allclose(lp5, _reference_log_prob(x1, mean5, std5), atol=1e-4, rtol=1e-4)

    mean6 = 0.5 * jax.random.normal(k[6], (D3,), dtype=jnp.float32)
    std6 = jnp.exp(0.25 * jax.random.normal(k[7], (D3,), dtype=jnp.float32))
    lp6 = jax.block_until_ready(gaussian_base_log_prob(x3, mean6, std6))
    assert jnp.allclose(lp6, _reference_log_prob(x3, mean6, std6), atol=1e-4, rtol=1e-4)

    # 6) bf16 input (halves HBM traffic; kernel upcasts to f32).
    x7 = x1.astype(jnp.bfloat16)
    lp7 = jax.block_until_ready(base1.log_prob(x7))
    assert jnp.allclose(lp7, _reference_log_prob(x7, base1.mean, base1.std), atol=1e-3, rtol=1e-3)

    print("KERNEL_OK")
</pallas_src>

<mosaic_0001>
module attributes {stable_mosaic.version = 11 : i64} {
  func.func @_packed_logprob_kernel(%arg0: i32, %arg1: memref<16x128xf32, #tpu.memory_space<vmem>>, %arg2: memref<128x4xf32, #tpu.memory_space<vmem>>, %arg3: memref<1xf32, #tpu.memory_space<smem>>, %arg4: memref<16x4xf32, #tpu.memory_space<vmem>>) attributes {dimension_semantics = [#tpu.dimension_semantics<parallel>], iteration_bounds = array<i64: 1>, scalar_prefetch = 0 : i64, scratch_operands = 0 : i64, tpu.core_type = #tpu.core_type<tc>, window_params = [{transform_indices = @transform_0, window_bounds = array<i64: 16, 128>}, {pipeline_mode = #tpu.pipeline_mode<synchronous>, transform_indices = @transform_1, window_bounds = array<i64: 128, 4>}, {transform_indices = @transform_2, window_bounds = array<i64: 1>}, {transform_indices = @transform_3, window_bounds = array<i64: 16, 4>}]} {
    %c0 = arith.constant 0 : index
    %c0_0 = arith.constant 0 : index
    %0 = vector.load %arg1[%c0, %c0_0] : memref<16x128xf32, #tpu.memory_space<vmem>>, vector<16x128xf32>
    %1 = arith.mulf %0, %0 : vector<16x128xf32>
    %c0_1 = arith.constant 0 : index
    %c0_2 = arith.constant 0 : index
    %2 = vector.load %arg2[%c0_1, %c0_2] : memref<128x4xf32, #tpu.memory_space<vmem>>, vector<128x4xf32>
    %cst = arith.constant dense<0.000000e+00> : vector<16x4xf32>
    %3 = tpu.matmul %1, %2, %cst {dimension_numbers = #tpu.dot_dimension_numbers<[1], [0], [0], [1], [0, 0, 1, 1], [], []>, precision = #tpu.contract_precision<fp32>} : vector<16x128xf32>, vector<128x4xf32>, vector<16x4xf32> -> vector<16x4xf32>
    %cst_3 = arith.constant -5.000000e-01 : f32
    %4 = vector.broadcast %cst_3 : f32 to vector<16x4xf32>
    %5 = arith.mulf %4, %3 : vector<16x4xf32>
    %c0_4 = arith.constant 0 : index
    %6 = memref.load %arg3[%c0_4] : memref<1xf32, #tpu.memory_space<smem>>
    %7 = vector.broadcast %6 : f32 to vector<16x4xf32>
    %8 = arith.addf %5, %7 : vector<16x4xf32>
    %c0_5 = arith.constant 0 : index
    %c0_6 = arith.constant 0 : index
    %9 = vector.load %arg4[%c0_5, %c0_6] : memref<16x4xf32, #tpu.memory_space<vmem>>, vector<16x4xf32>
    tpu.vector_store %arg4[%c0_5, %c0_6], %8 {strides = array<i32>} : memref<16x4xf32, #tpu.memory_space<vmem>>, vector<16x4xf32>,
    return
  }
  func.func @transform_0(%arg0: i32) -> (i32, i32) {
    %c0_i32 = arith.constant 0 : i32
    %c0_i32_0 = arith.constant 0 : i32
    return %arg0, %c0_i32 : i32, i32
  }
  func.func @transform_1(%arg0: i32) -> (i32, i32) {
    %c0_i32 = arith.constant 0 : i32
    %c0_i32_0 = arith.constant 0 : i32
    %c0_i32_1 = arith.constant 0 : i32
    return %c0_i32, %c0_i32_0 : i32, i32
  }
  func.func @transform_2(%arg0: i32) -> i32 {
    %c0_i32 = arith.constant 0 : i32
    %c0_i32_0 = arith.constant 0 : i32
    return %c0_i32 : i32
  }
  func.func @transform_3(%arg0: i32) -> (i32, i32) {
    %c0_i32 = arith.constant 0 : i32
    %c0_i32_0 = arith.constant 0 : i32
    return %arg0, %c0_i32 : i32, i32
  }
}

</mosaic_0001>

<llo_original>
// kernel: tpu_custom_call.1
$region0: #{tpu_custom_call.1}
  #allocation0 [shape = 'u32[]', space=smem, size = 0x4, offset = 0x4, fixed_abs, tag = 'smem constant byte address 0x4 - core index']
  #allocation1 [shape = 'u32[72,128]{1,0:T(1,128)}', space=vmem, size = 0x9000, scoped, tag = 'internal scratch']
  #allocation2 [shape = 'f32[1]{0:T(128)S(6)}', space=smem, size = 0x200, scoped, tag = 'scoped memory for tpu_custom_call.1']
  %s0 = inlined_call_operand.vmem [shape: f32[16,128], index: 0, kind: input, shape index: {}]
  %s1 = inlined_call_operand.vmem [shape: f32[128,4], index: 1, kind: input, shape index: {}]
  %s2 = inlined_call_operand.<no memory space> [shape: f32[1], index: 2, kind: input, shape index: {}]
  %s3 = inlined_call_operand.vmem [shape: f32[16,4], index: 3, kind: output, shape index: {}]
  %s4 = sld [smem:[#allocation0]]
  $region22: #{tpu_custom_call.1} parent=0
    _
  %s6 = ssub.s32 1, %s4
  %s7 = scalar_select 0, %s6, %s4
  %8 = sst [smem:[#allocation2]] %s2
  // Predicated region
  $region2: #{tpu_custom_call.1} parent=0 // pred_check
    _
  $region3: #{tpu_custom_call.1} parent=0 // pred_check_branch
    %10 = sbr.rel (0) target = $region5
  $region4: #{tpu_custom_call.1} parent=0 // pred_region
    _
  $region5: #{tpu_custom_call.1} parent=0 // pred_fallthru
    _
  // Predicated region
  $region6: #{tpu_custom_call.1} parent=0 // pred_check
    _
  $region7: #{tpu_custom_call.1} parent=0 // pred_check_branch
    %12 = sbr.rel (0) target = $region9
  $region8: #{tpu_custom_call.1} parent=0 // pred_region
    _
  $region9: #{tpu_custom_call.1} parent=0 // pred_fallthru
    _
  // Predicated region
  $region10: #{tpu_custom_call.1} parent=0 // pred_check
    _
  $region11: #{tpu_custom_call.1} parent=0 // pred_check_branch
    %14 = sbr.rel (0) target = $region13
  $region12: #{tpu_custom_call.1} parent=0 // pred_region
    _
  $region13: #{tpu_custom_call.1} parent=0 // pred_fallthru
    _
  %v15 = vld [vmem:[%s0] sm:$0xff]
  %v16 = vld [vmem:[%s0 + $0x8] sm:$0xff]
  %v17 = vmul.f32 %v15, %v15
  %v18 = vmul.f32 %v16, %v16
  %v19 = vld [vmem:[%s1] sm:$0xff]
  %v20 = vld [vmem:[%s1 + $0x8] sm:$0xff]
  %v21 = vld [vmem:[%s1 + $0x10] sm:$0xff]
  %v22 = vld [vmem:[%s1 + $0x18] sm:$0xff]
  %v23 = vld [vmem:[%s1 + $0x20] sm:$0xff]
  %v24 = vld [vmem:[%s1 + $0x28] sm:$0xff]
  %v25 = vld [vmem:[%s1 + $0x30] sm:$0xff]
  %v26 = vld [vmem:[%s1 + $0x38] sm:$0xff]
  %v27 = vld [vmem:[%s1 + $0x40] sm:$0xff]
  %v28 = vld [vmem:[%s1 + $0x48] sm:$0xff]
  %v29 = vld [vmem:[%s1 + $0x50] sm:$0xff]
  %v30 = vld [vmem:[%s1 + $0x58] sm:$0xff]
  %v31 = vld [vmem:[%s1 + $0x60] sm:$0xff]
  %v32 = vld [vmem:[%s1 + $0x68] sm:$0xff]
  %v33 = vld [vmem:[%s1 + $0x70] sm:$0xff]
  %v34 = vld [vmem:[%s1 + $0x78] sm:$0xff]
  %v35 = vand.u32 %v34, 4294901760
  %36 = vmatpush.msra.mxu0 %v35
  %v37 = vand.u32 %v33, 4294901760
  %38 = vmatpush.msra.mxu0 %v37
  %v39 = vand.u32 %v32, 4294901760
  %40 = vmatpush.msra.mxu0 %v39
  %v41 = vand.u32 %v31, 4294901760
  %42 = vmatpush.msra.mxu0 %v41
  %v43 = vand.u32 %v30, 4294901760
  %44 = vmatpush.msra.mxu0 %v43
  %v45 = vand.u32 %v29, 4294901760
  %46 = vmatpush.msra.mxu0 %v45
  %v47 = vand.u32 %v28, 4294901760
  %48 = vmatpush.msra.mxu0 %v47
  %v49 = vand.u32 %v27, 4294901760
  %50 = vmatpush.msra.mxu0 %v49
  %v51 = vand.u32 %v26, 4294901760
  %52 = vmatpush.msra.mxu0 %v51
  %v53 = vand.u32 %v25, 4294901760
  %54 = vmatpush.msra.mxu0 %v53
  %v55 = vand.u32 %v24, 4294901760
  %56 = vmatpush.msra.mxu0 %v55
  %v57 = vand.u32 %v23, 4294901760
  %58 = vmatpush.msra.mxu0 %v57
  %v59 = vand.u32 %v22, 4294901760
  %60 = vmatpush.msra.mxu0 %v59
  %v61 = vand.u32 %v21, 4294901760
  %62 = vmatpush.msra.mxu0 %v61
  %v63 = vand.u32 %v20, 4294901760
  %64 = vmatpush.msra.mxu0 %v63
  %v65 = vand.u32 %v19, 4294901760
  %66 = vmatpush.msra.mxu0 %v65
  %v67 = vand.u32 %v17, 4294901760
  %v68 = vsub.f32 %v17, %v67
  %v69 = vand.u32 %v68, 4294901760
  %v70 = vsub.f32 %v68, %v69
  %v71 = vand.u32 %v70, 4294901760
  %72 = vmatmul.f32.gmra.mxu0 %v71
  %v73 = vpop.f32.mrf.mxu0
  %v74 = vadd.f32 0.0, %v73
  %v75 = vand.u32 %v18, 4294901760
  %v76 = vsub.f32 %v18, %v75
  %v77 = vand.u32 %v76, 4294901760
  %v78 = vsub.f32 %v76, %v77
  %v79 = vand.u32 %v78, 4294901760
  %80 = vmatmul.f32.gmra.mxu0 %v79
  %v81 = vpop.f32.mrf.mxu0
  %v82 = vadd.f32 0.0, %v81
  %83 = vdwg.mxu0
  %v84 = vand.u32 %v34, 4294901760
  %v85 = vsub.f32 %v34, %v84
  %v86 = vand.u32 %v85, 4294901760
  %v87 = vsub.f32 %v85, %v86
  %v88 = vand.u32 %v87, 4294901760
  %89 = vmatpush.msra.mxu0 %v88
  %v90 = vand.u32 %v33, 4294901760
  %v91 = vsub.f32 %v33, %v90
  %v92 = vand.u32 %v91, 4294901760
  %v93 = vsub.f32 %v91, %v92
  %v94 = vand.u32 %v93, 4294901760
  %95 = vmatpush.msra.mxu0 %v94
  %v96 = vand.u32 %v32, 4294901760
  %v97 = vsub.f32 %v32, %v96
  %v98 = vand.u32 %v97, 4294901760
  %v99 = vsub.f32 %v97, %v98
  %v100 = vand.u32 %v99, 4294901760
  %101 = vmatpush.msra.mxu0 %v100
  %v102 = vand.u32 %v31, 4294901760
  %v103 = vsub.f32 %v31, %v102
  %v104 = vand.u32 %v103, 4294901760
  %v105 = vsub.f32 %v103, %v104
  %v106 = vand.u32 %v105, 4294901760
  %107 = vmatpush.msra.mxu0 %v106
  %v108 = vand.u32 %v30, 4294901760
  %v109 = vsub.f32 %v30, %v108
  %v110 = vand.u32 %v109, 4294901760
  %v111 = vsub.f32 %v109, %v110
  %v112 = vand.u32 %v111, 4294901760
  %113 = vmatpush.msra.mxu0 %v112
  %v114 = vand.u32 %v29, 4294901760
  %v115 = vsub.f32 %v29, %v114
  %v116 = vand.u32 %v115, 4294901760
  %v117 = vsub.f32 %v115, %v116
  %v118 = vand.u32 %v117, 4294901760
  %119 = vmatpush.msra.mxu0 %v118
  %v120 = vand.u32 %v28, 4294901760
  %v121 = vsub.f32 %v28, %v120
  %v122 = vand.u32 %v121, 4294901760
  %v123 = vsub.f32 %v121, %v122
  %v124 = vand.u32 %v123, 4294901760
  %125 = vmatpush.msra.mxu0 %v124
  %v126 = vand.u32 %v27, 4294901760
  %v127 = vsub.f32 %v27, %v126
  %v128 = vand.u32 %v127, 4294901760
  %v129 = vsub.f32 %v127, %v128
  %v130 = vand.u32 %v129, 4294901760
  %131 = vmatpush.msra.mxu0 %v130
  %v132 = vand.u32 %v26, 4294901760
  %v133 = vsub.f32 %v26, %v132
  %v134 = vand.u32 %v133, 4294901760
  %v135 = vsub.f32 %v133, %v134
  %v136 = vand.u32 %v135, 4294901760
  %137 = vmatpush.msra.mxu0 %v136
  %v138 = vand.u32 %v25, 4294901760
  %v139 = vsub.f32 %v25, %v138
  %v140 = vand.u32 %v139, 4294901760
  %v141 = vsub.f32 %v139, %v140
  %v142 = vand.u32 %v141, 4294901760
  %143 = vmatpush.msra.mxu0 %v142
  %v144 = vand.u32 %v24, 4294901760
  %v145 = vsub.f32 %v24, %v144
  %v146 = vand.u32 %v145, 4294901760
  %v147 = vsub.f32 %v145, %v146
  %v148 = vand.u32 %v147, 4294901760
  %149 = vmatpush.msra.mxu0 %v148
  %v150 = vand.u32 %v23, 4294901760
  %v151 = vsub.f32 %v23, %v150
  %v152 = vand.u32 %v151, 4294901760
  %v153 = vsub.f32 %v151, %v152
  %v154 = vand.u32 %v153, 4294901760
  %155 = vmatpush.msra.mxu0 %v154
  %v156 = vand.u32 %v22, 4294901760
  %v157 = vsub.f32 %v22, %v156
  %v158 = vand.u32 %v157, 4294901760
  %v159 = vsub.f32 %v157, %v158
  %v160 = vand.u32 %v159, 4294901760
  %161 = vmatpush.msra.mxu0 %v160
  %v162 = vand.u32 %v21, 4294901760
  %v163 = vsub.f32 %v21, %v162
  %v164 = vand.u32 %v163, 4294901760
  %v165 = vsub.f32 %v163, %v164
  %v166 = vand.u32 %v165, 4294901760
  %167 = vmatpush.msra.mxu0 %v166
  %v168 = vand.u32 %v20, 4294901760
  %v169 = vsub.f32 %v20, %v168
  %v170 = vand.u32 %v169, 4294901760
  %v171 = vsub.f32 %v169, %v170
  %v172 = vand.u32 %v171, 4294901760
  %173 = vmatpush.msra.mxu0 %v172
  %v174 = vand.u32 %v19, 4294901760
  %v175 = vsub.f32 %v19, %v174
  %v176 = vand.u32 %v175, 4294901760
  %v177 = vsub.f32 %v175, %v176
  %v178 = vand.u32 %v177, 4294901760
  %179 = vmatpush.msra.mxu0 %v178
  %v180 = vand.u32 %v17, 4294901760
  %181 = vmatmul.f32.gmra.mxu0 %v180
  %v182 = vpop.f32.mrf.mxu0
  %v183 = vadd.f32 %v74, %v182
  %v184 = vand.u32 %v18, 4294901760
  %185 = vmatmul.f32.gmra.mxu0 %v184
  %v186 = vpop.f32.mrf.mxu0
  %v187 = vadd.f32 %v82, %v186
  %188 = vdwg.mxu0
  %v189 = vand.u32 %v34, 4294901760
  %v190 = vsub.f32 %v34, %v189
  %191 = vmatpush.msra.mxu0 %v190
  %v192 = vand.u32 %v33, 4294901760
  %v193 = vsub.f32 %v33, %v192
  %194 = vmatpush.msra.mxu0 %v193
  %v195 = vand.u32 %v32, 4294901760
  %v196 = vsub.f32 %v32, %v195
  %197 = vmatpush.msra.mxu0 %v196
  %v198 = vand.u32 %v31, 4294901760
  %v199 = vsub.f32 %v31, %v198
  %200 = vmatpush.msra.mxu0 %v199
  %v201 = vand.u32 %v30, 4294901760
  %v202 = vsub.f32 %v30, %v201
  %203 = vmatpush.msra.mxu0 %v202
  %v204 = vand.u32 %v29, 4294901760
  %v205 = vsub.f32 %v29, %v204
  %206 = vmatpush.msra.mxu0 %v205
  %v207 = vand.u32 %v28, 4294901760
  %v208 = vsub.f32 %v28, %v207
  %209 = vmatpush.msra.mxu0 %v208
  %v210 = vand.u32 %v27, 4294901760
  %v211 = vsub.f32 %v27, %v210
  %212 = vmatpush.msra.mxu0 %v211
  %v213 = vand.u32 %v26, 4294901760
  %v214 = vsub.f32 %v26, %v213
  %215 = vmatpush.msra.mxu0 %v214
  %v216 = vand.u32 %v25, 4294901760
  %v217 = vsub.f32 %v25, %v216
  %218 = vmatpush.msra.mxu0 %v217
  %v219 = vand.u32 %v24, 4294901760
  %v220 = vsub.f32 %v24, %v219
  %221 = vmatpush.msra.mxu0 %v220
  %v222 = vand.u32 %v23, 4294901760
  %v223 = vsub.f32 %v23, %v222
  %224 = vmatpush.msra.mxu0 %v223
  %v225 = vand.u32 %v22, 4294901760
  %v226 = vsub.f32 %v22, %v225
  %227 = vmatpush.msra.mxu0 %v226
  %v228 = vand.u32 %v21, 4294901760
  %v229 = vsub.f32 %v21, %v228
  %230 = vmatpush.msra.mxu0 %v229
  %v231 = vand.u32 %v20, 4294901760
  %v232 = vsub.f32 %v20, %v231
  %233 = vmatpush.msra.mxu0 %v232
  %v234 = vand.u32 %v19, 4294901760
  %v235 = vsub.f32 %v19, %v234
  %236 = vmatpush.msra.mxu0 %v235
  %v237 = vand.u32 %v17, 4294901760
  %v238 = vsub.f32 %v17, %v237
  %239 = vmatmul.f32.gmra.mxu0 %v238
  %v240 = vpop.f32.mrf.mxu0
  %v241 = vadd.f32 %v183, %v240
  %v242 = vand.u32 %v18, 4294901760
  %v243 = vsub.f32 %v18, %v242
  %244 = vmatmul.f32.gmra.mxu0 %v243
  %v245 = vpop.f32.mrf.mxu0
  %v246 = vadd.f32 %v187, %v245
  %247 = vdwg.mxu0
  %v248 = vand.u32 %v34, 4294901760
  %249 = vmatpush.msra.mxu0 %v248
  %v250 = vand.u32 %v33, 4294901760
  %251 = vmatpush.msra.mxu0 %v250
  %v252 = vand.u32 %v32, 4294901760
  %253 = vmatpush.msra.mxu0 %v252
  %v254 = vand.u32 %v31, 4294901760
  %255 = vmatpush.msra.mxu0 %v254
  %v256 = vand.u32 %v30, 4294901760
  %257 = vmatpush.msra.mxu0 %v256
  %v258 = vand.u32 %v29, 4294901760
  %259 = vmatpush.msra.mxu0 %v258
  %v260 = vand.u32 %v28, 4294901760
  %261 = vmatpush.msra.mxu0 %v260
  %v262 = vand.u32 %v27, 4294901760
  %263 = vmatpush.msra.mxu0 %v262
  %v264 = vand.u32 %v26, 4294901760
  %265 = vmatpush.msra.mxu0 %v264
  %v266 = vand.u32 %v25, 4294901760
  %267 = vmatpush.msra.mxu0 %v266
  %v268 = vand.u32 %v24, 4294901760
  %269 = vmatpush.msra.mxu0 %v268
  %v270 = vand.u32 %v23, 4294901760
  %271 = vmatpush.msra.mxu0 %v270
  %v272 = vand.u32 %v22, 4294901760
  %273 = vmatpush.msra.mxu0 %v272
  %v274 = vand.u32 %v21, 4294901760
  %275 = vmatpush.msra.mxu0 %v274
  %v276 = vand.u32 %v20, 4294901760
  %277 = vmatpush.msra.mxu0 %v276
  %v278 = vand.u32 %v19, 4294901760
  %279 = vmatpush.msra.mxu0 %v278
  %v280 = vand.u32 %v17, 4294901760
  %v281 = vsub.f32 %v17, %v280
  %v282 = vand.u32 %v281, 4294901760
  %283 = vmatmul.f32.gmra.mxu0 %v282
  %v284 = vpop.f32.mrf.mxu0
  %v285 = vadd.f32 %v241, %v284
  %v286 = vand.u32 %v18, 4294901760
  %v287 = vsub.f32 %v18, %v286
  %v288 = vand.u32 %v287, 4294901760
  %289 = vmatmul.f32.gmra.mxu0 %v288
  %v290 = vpop.f32.mrf.mxu0
  %v291 = vadd.f32 %v246, %v290
  %292 = vdwg.mxu0
  %v293 = vand.u32 %v34, 4294901760
  %v294 = vsub.f32 %v34, %v293
  %v295 = vand.u32 %v294, 4294901760
  %296 = vmatpush.msra.mxu0 %v295
  %v297 = vand.u32 %v33, 4294901760
  %v298 = vsub.f32 %v33, %v297
  %v299 = vand.u32 %v298, 4294901760
  %300 = vmatpush.msra.mxu0 %v299
  %v301 = vand.u32 %v32, 4294901760
  %v302 = vsub.f32 %v32, %v301
  %v303 = vand.u32 %v302, 4294901760
  %304 = vmatpush.msra.mxu0 %v303
  %v305 = vand.u32 %v31, 4294901760
  %v306 = vsub.f32 %v31, %v305
  %v307 = vand.u32 %v306, 4294901760
  %308 = vmatpush.msra.mxu0 %v307
  %v309 = vand.u32 %v30, 4294901760
  %v310 = vsub.f32 %v30, %v309
  %v311 = vand.u32 %v310, 4294901760
  %312 = vmatpush.msra.mxu0 %v311
  %v313 = vand.u32 %v29, 4294901760
  %v314 = vsub.f32 %v29, %v313
  %v315 = vand.u32 %v314, 4294901760
  %316 = vmatpush.msra.mxu0 %v315
  %v317 = vand.u32 %v28, 4294901760
  %v318 = vsub.f32 %v28, %v317
  %v319 = vand.u32 %v318, 4294901760
  %320 = vmatpush.msra.mxu0 %v319
  %v321 = vand.u32 %v27, 4294901760
  %v322 = vsub.f32 %v27, %v321
  %v323 = vand.u32 %v322, 4294901760
  %324 = vmatpush.msra.mxu0 %v323
  %v325 = vand.u32 %v26, 4294901760
  %v326 = vsub.f32 %v26, %v325
  %v327 = vand.u32 %v326, 4294901760
  %328 = vmatpush.msra.mxu0 %v327
  %v329 = vand.u32 %v25, 4294901760
  %v330 = vsub.f32 %v25, %v329
  %v331 = vand.u32 %v330, 4294901760
  %332 = vmatpush.msra.mxu0 %v331
  %v333 = vand.u32 %v24, 4294901760
  %v334 = vsub.f32 %v24, %v333
  %v335 = vand.u32 %v334, 4294901760
  %336 = vmatpush.msra.mxu0 %v335
  %v337 = vand.u32 %v23, 4294901760
  %v338 = vsub.f32 %v23, %v337
  %v339 = vand.u32 %v338, 4294901760
  %340 = vmatpush.msra.mxu0 %v339
  %v341 = vand.u32 %v22, 4294901760
  %v342 = vsub.f32 %v22, %v341
  %v343 = vand.u32 %v342, 4294901760
  %344 = vmatpush.msra.mxu0 %v343
  %v345 = vand.u32 %v21, 4294901760
  %v346 = vsub.f32 %v21, %v345
  %v347 = vand.u32 %v346, 4294901760
  %348 = vmatpush.msra.mxu0 %v347
  %v349 = vand.u32 %v20, 4294901760
  %v350 = vsub.f32 %v20, %v349
  %v351 = vand.u32 %v350, 4294901760
  %352 = vmatpush.msra.mxu0 %v351
  %v353 = vand.u32 %v19, 4294901760
  %v354 = vsub.f32 %v19, %v353
  %v355 = vand.u32 %v354, 4294901760
  %356 = vmatpush.msra.mxu0 %v355
  %v357 = vand.u32 %v17, 4294901760
  %358 = vmatmul.f32.gmra.mxu0 %v357
  %v359 = vpop.f32.mrf.mxu0
  %v360 = vadd.f32 %v285, %v359
  %v361 = vand.u32 %v18, 4294901760
  %362 = vmatmul.f32.gmra.mxu0 %v361
  %v363 = vpop.f32.mrf.mxu0
  %v364 = vadd.f32 %v291, %v363
  %365 = vdwg.mxu0
  %v366 = vand.u32 %v34, 4294901760
  %367 = vmatpush.msra.mxu0 %v366
  %v368 = vand.u32 %v33, 4294901760
  %369 = vmatpush.msra.mxu0 %v368
  %v370 = vand.u32 %v32, 4294901760
  %371 = vmatpush.msra.mxu0 %v370
  %v372 = vand.u32 %v31, 4294901760
  %373 = vmatpush.msra.mxu0 %v372
  %v374 = vand.u32 %v30, 4294901760
  %375 = vmatpush.msra.mxu0 %v374
  %v376 = vand.u32 %v29, 4294901760
  %377 = vmatpush.msra.mxu0 %v376
  %v378 = vand.u32 %v28, 4294901760
  %379 = vmatpush.msra.mxu0 %v378
  %v380 = vand.u32 %v27, 4294901760
  %381 = vmatpush.msra.mxu0 %v380
  %v382 = vand.u32 %v26, 4294901760
  %383 = vmatpush.msra.mxu0 %v382
  %v384 = vand.u32 %v25, 4294901760
  %385 = vmatpush.msra.mxu0 %v384
  %v386 = vand.u32 %v24, 4294901760
  %387 = vmatpush.msra.mxu0 %v386
  %v388 = vand.u32 %v23, 4294901760
  %389 = vmatpush.msra.mxu0 %v388
  %v390 = vand.u32 %v22, 4294901760
  %391 = vmatpush.msra.mxu0 %v390
  %v392 = vand.u32 %v21, 4294901760
  %393 = vmatpush.msra.mxu0 %v392
  %v394 = vand.u32 %v20, 4294901760
  %395 = vmatpush.msra.mxu0 %v394
  %v396 = vand.u32 %v19, 4294901760
  %397 = vmatpush.msra.mxu0 %v396
  %v398 = vand.u32 %v17, 4294901760
  %399 = vmatmul.f32.gmra.mxu0 %v398
  %v400 = vpop.f32.mrf.mxu0
  %v401 = vadd.f32 %v360, %v400
  %v402 = vand.u32 %v18, 4294901760
  %403 = vmatmul.f32.gmra.mxu0 %v402
  %v404 = vpop.f32.mrf.mxu0
  %v405 = vadd.f32 %v364, %v404
  %406 = vdwg.mxu0
  %v407 = vmul.f32 %v401, -0.5
  %v408 = vmul.f32 %v405, -0.5
  %s409 = sld [smem:[#allocation2]]
  %v410 = vstv %s409
  %v411 = vadd.f32 %v407, %v410
  %v412 = vadd.f32 %v408, %v410
  %vm413 = vcmask 31744
  %414 = vst.msk [vmem:[%s3] sm:$0xff] %vm413, %v411
  %415 = vst.msk [vmem:[%s3 + $0x8] sm:$0xff] %vm413, %v412
  // Predicated region
  $region14: #{tpu_custom_call.1} parent=0 // pred_check
    _
  $region15: #{tpu_custom_call.1} parent=0 // pred_check_branch
    %417 = sbr.rel (0) target = $region17
  $region16: #{tpu_custom_call.1} parent=0 // pred_region
    _
  $region17: #{tpu_custom_call.1} parent=0 // pred_fallthru
    _
  // Predicated region
  $region18: #{tpu_custom_call.1} parent=0 // pred_check
    _
  $region19: #{tpu_custom_call.1} parent=0 // pred_check_branch
    %419 = sbr.rel (0) target = $region21
  $region20: #{tpu_custom_call.1} parent=0 // pred_region
    _
  $region21: #{tpu_custom_call.1} parent=0 // pred_fallthru
    _

</llo_original>
